<compile_context>
chip_gen: v7x
topology: tpu7x:2x2x1
jax: 0.10.0
libtpu: 0.0.40
codegen_flags: <defaults>
</compile_context>

<pallas_src>
import functools

import numpy as np

import jax
import jax.numpy as jnp
from jax.experimental import pallas as pl
from jax.experimental.pallas import tpu as pltpu


# ----------------------------------------------------------------------------
# Helpers
# ----------------------------------------------------------------------------
def _round_up(x, m):
    return ((x + m - 1) // m) * m


def _pick_row_tile(counts, cap=1024):
    """Largest 128*2^k row tile whose per-type padding overhead stays small."""
    counts = tuple(int(n) for n in counts)
    base = sum(_round_up(n, 128) for n in counts)
    for t in (1024, 512, 256, 128):
        if t > cap:
            continue
        if sum(_round_up(n, t) for n in counts) <= int(1.1 * base):
            return t
    return 128


def _mosaic_params(semantics, ws_bytes):
    # Explicit scoped-VMEM budget: enough headroom for double buffering, but
    # never above v7x's 64 MiB physical VMEM per TensorCore.
    limit = int(min(64 * 2**20, max(32 * 2**20, 3 * int(ws_bytes))))
    return pltpu.CompilerParams(dimension_semantics=semantics,
                                vmem_limit_bytes=limit)


# ----------------------------------------------------------------------------
# Pallas kernels
# ----------------------------------------------------------------------------
def _linear_relu_kernel(type_tbl, x_ref, w_ref, o_ref):
    acc = jnp.dot(x_ref[...], w_ref[...], preferred_element_type=jnp.float32)
    o_ref[...] = jnp.maximum(acc, 0.0).astype(o_ref.dtype)


def pallas_batched_linear_relu(type_tbl, x_slab, w_stk, tile):
    """relu(x @ W[type]) for every node type in one call.

    x_slab: [N_total, K] bf16 row slab (all types, tile-aligned blocks).
    w_stk : [T, K, H] bf16 stacked per-type weights.
    type_tbl: [N_total // tile] int32 row-block -> type index.
    Output: [N_total, H] bf16 slab (feeds message passing directly).
    """
    N, K = x_slab.shape
    T, K2, H = w_stk.shape
    assert K == K2 and N % tile == 0
    nb = N // tile
    ws = 2 * (tile * K * 2 + K * H * 2 + tile * H * 2)
    return pl.pallas_call(
        _linear_relu_kernel,
        grid_spec=pltpu.PrefetchScalarGridSpec(
            num_scalar_prefetch=1,
            grid=(nb,),
            in_specs=[
                pl.BlockSpec((tile, K), lambda i, tt: (i, 0)),
                pl.BlockSpec((None, K, H), lambda i, tt: (tt[i], 0, 0)),
            ],
            out_specs=pl.BlockSpec((tile, H), lambda i, tt: (i, 0)),
        ),
        out_shape=jax.ShapeDtypeStruct((N, H), jnp.bfloat16),
        compiler_params=_mosaic_params(("parallel",), ws),
    )(type_tbl, x_slab, w_stk)


def _combine_kernel(blk_tbl, src_tbl, val_tbl, nrel_tbl,
                    adj_ref, hsrc_ref, h_ref, h0_ref, o_ref, acc_ref,
                    *, alpha, beta, j_max):
    i = pl.program_id(0)
    j = pl.program_id(1)

    @pl.when(j == 0)
    def _():
        acc_ref[...] = jnp.zeros_like(acc_ref)

    # Block-sparse: only nonzero adjacency blocks do MXU work.
    @pl.when(val_tbl[i * j_max + j] > 0)
    def _():
        acc_ref[...] += jnp.dot(adj_ref[...], hsrc_ref[...],
                                preferred_element_type=jnp.float32)

    @pl.when(j == pl.num_programs(1) - 1)
    def _():
        inv = 1.0 / (nrel_tbl[i].astype(jnp.float32) + 1.0)
        mean = (alpha * h_ref[...].astype(jnp.float32) + acc_ref[...]) * inv
        o_ref[...] = (beta * h0_ref[...].astype(jnp.float32)
                      + (1.0 - beta) * mean).astype(o_ref.dtype)


def pallas_combine(blk_tbl, src_tbl, val_tbl, nrel_tbl, adj_blocks,
                   h_slab, h0_slab, *, tile, j_max, alpha, beta):
    """Fused message passing + residual mix for ALL node types in one call.

    new_h = beta*h0 + (1-beta) * mean([alpha*h] + [adj_r @ h_src_r ...])
    adj_blocks: [NB, tile, tile] bf16 nonzero adjacency blocks (BSR-like).
    h_slab/h0_slab: [N_total, H] bf16 row slabs (all node types).
    """
    N, H = h_slab.shape
    assert N % tile == 0
    nb = N // tile
    kernel = functools.partial(_combine_kernel, alpha=float(alpha),
                               beta=float(beta), j_max=int(j_max))
    ws = 2 * (tile * tile * 2 + 4 * tile * H * 2) + tile * H * 4
    return pl.pallas_call(
        kernel,
        grid_spec=pltpu.PrefetchScalarGridSpec(
            num_scalar_prefetch=4,
            grid=(nb, j_max),
            in_specs=[
                # adjacency block for (row tile i, step j)
                pl.BlockSpec((None, tile, tile),
                             lambda i, j, blk, src, val, nrel:
                             (blk[i * j_max + j], 0, 0)),
                # matching source-feature row block out of the h slab
                pl.BlockSpec((tile, H),
                             lambda i, j, blk, src, val, nrel:
                             (src[i * j_max + j], 0)),
                # destination h and h0 (row block i of the slabs)
                pl.BlockSpec((tile, H),
                             lambda i, j, blk, src, val, nrel: (i, 0)),
                pl.BlockSpec((tile, H),
                             lambda i, j, blk, src, val, nrel: (i, 0)),
            ],
            out_specs=pl.BlockSpec((tile, H),
                                   lambda i, j, blk, src, val, nrel: (i, 0)),
            scratch_shapes=[pltpu.VMEM((tile, H), jnp.float32)],
        ),
        out_shape=jax.ShapeDtypeStruct((N, H), jnp.bfloat16),
        compiler_params=_mosaic_params(("parallel", "arbitrary"), ws),
    )(blk_tbl, src_tbl, val_tbl, nrel_tbl, adj_blocks, h_slab, h_slab, h0_slab)


def _out_linear_kernel(h_ref, w_ref, b_ref, o_ref):
    acc = jnp.dot(h_ref[...], w_ref[...], preferred_element_type=jnp.float32)
    o_ref[...] = acc + b_ref[...]


def pallas_out_linear(h_slab, w, b2, *, tile, row_blk_off, n_blocks):
    """h_slab[target rows] @ w + b; reads the target type straight out of the slab."""
    N, H = h_slab.shape
    H2, O = w.shape
    assert H == H2 and b2.shape == (1, O)
    ws = 2 * (tile * H * 2 + H * O * 2 + O * 4 + tile * O * 4)
    return pl.pallas_call(
        _out_linear_kernel,
        grid=(n_blocks,),
        in_specs=[
            pl.BlockSpec((tile, H), lambda i: (i + row_blk_off, 0)),
            pl.BlockSpec((H, O), lambda i: (0, 0)),
            pl.BlockSpec((1, O), lambda i: (0, 0)),
        ],
        out_specs=pl.BlockSpec((tile, O), lambda i: (i, 0)),
        out_shape=jax.ShapeDtypeStruct((n_blocks * tile, O), jnp.float32),
        compiler_params=_mosaic_params(("parallel",), ws),
    )(h_slab, w, b2)


# ----------------------------------------------------------------------------
# One-time prep (padding, slabs, stacked weights, block-sparse adjacency)
# ----------------------------------------------------------------------------
def hetero_gcn2_prepare(x_dict, adj_t_dict, params, *, num_layers):
    node_types = sorted(x_dict.keys())
    t_index = {nt: i for i, nt in enumerate(node_types)}
    hidden = int(params["lins"][node_types[0]][0].shape[1])
    out_ch = int(params["out_b"].shape[0])
    h_pad = _round_up(hidden, 128)
    o_pad = _round_up(out_ch, 128)

    counts = {nt: int(x_dict[nt].shape[0]) for nt in node_types}
    tile = _pick_row_tile(counts.values())
    n_pad = {nt: _round_up(counts[nt], tile) for nt in node_types}
    row_off, off = {}, 0
    for nt in node_types:
        row_off[nt] = off
        off += n_pad[nt]
    n_total = off
    rb_total = n_total // tile
    blk_off = {nt: row_off[nt] // tile for nt in node_types}

    # Per-row-block type index and incoming-relation count.
    nrel = {nt: 0 for nt in node_types}
    for (_src, _rel, dst) in adj_t_dict.keys():
        nrel[dst] += 1
    type_tbl = np.zeros((rb_total,), np.int32)
    nrel_tbl = np.zeros((rb_total,), np.int32)
    for nt in node_types:
        sl = slice(blk_off[nt], blk_off[nt] + n_pad[nt] // tile)
        type_tbl[sl] = t_index[nt]
        nrel_tbl[sl] = nrel[nt]

    # Layer-0 input slab + stacked per-type weights (zero padding is exact).
    k_pad = max(_round_up(int(x_dict[nt].shape[1]), 128) for nt in node_types)
    x_slab = np.zeros((n_total, k_pad), np.float32)
    w0 = np.zeros((len(node_types), k_pad, h_pad), np.float32)
    wl = [np.zeros((len(node_types), h_pad, h_pad), np.float32)
          for _ in range(num_layers - 1)]
    for nt in node_types:
        x = np.asarray(jax.device_get(x_dict[nt]), np.float32)
        x_slab[row_off[nt]:row_off[nt] + counts[nt], :x.shape[1]] = x
        w = np.asarray(jax.device_get(params["lins"][nt][0]), np.float32)
        w0[t_index[nt], :w.shape[0], :w.shape[1]] = w
        for l in range(1, num_layers):
            w = np.asarray(jax.device_get(params["lins"][nt][l]), np.float32)
            wl[l - 1][t_index[nt], :w.shape[0], :w.shape[1]] = w

    # Block-sparse adjacency (keep only nonzero tile x tile blocks).
    per_row = [[] for _ in range(rb_total)]  # (block_data, src_row_block)
    for (src, _rel, dst), adj in adj_t_dict.items():
        a = np.asarray(jax.device_get(adj), np.float32)
        ap = np.zeros((n_pad[dst], n_pad[src]), np.float32)
        ap[:a.shape[0], :a.shape[1]] = a
        nbd, nbs = n_pad[dst] // tile, n_pad[src] // tile
        ab = ap.reshape(nbd, tile, nbs, tile).transpose(0, 2, 1, 3)
        nz = np.abs(ab).max(axis=(2, 3)) > 0.0
        for bi in range(nbd):
            gi = blk_off[dst] + bi
            for bj in range(nbs):
                if nz[bi, bj]:
                    per_row[gi].append((ab[bi, bj], blk_off[src] + bj))

    j_max = max(1, max(len(b) for b in per_row)) if per_row else 1
    blocks = []
    blk_tbl = np.zeros((rb_total * j_max,), np.int32)
    src_tbl = np.zeros((rb_total * j_max,), np.int32)
    val_tbl = np.zeros((rb_total * j_max,), np.int32)
    for gi, blist in enumerate(per_row):
        last_blk, last_src = 0, 0
        for j in range(j_max):
            if j < len(blist):
                data, sb = blist[j]
                last_blk = len(blocks)
                blocks.append(data)
                last_src = sb
                val_tbl[gi * j_max + j] = 1
            # Invalid steps repeat the previous indices so consecutive grid
            # steps reuse the resident tile (DMA skipped); valid==0 gates MXU.
            blk_tbl[gi * j_max + j] = last_blk
            src_tbl[gi * j_max + j] = last_src
    if not blocks:
        blocks.append(np.zeros((tile, tile), np.float32))
    adj_blocks = np.stack(blocks, axis=0)

    out_w = np.zeros((h_pad, o_pad), np.float32)
    out_w[:hidden, :out_ch] = np.asarray(jax.device_get(params["out_w"]),
                                         np.float32)
    out_b = np.zeros((1, o_pad), np.float32)
    out_b[0, :out_ch] = np.asarray(jax.device_get(params["out_b"]), np.float32)

    return dict(
        node_types=node_types, tile=tile, j_max=j_max,
        counts=counts, n_pad=n_pad, blk_off=blk_off, out_ch=out_ch,
        type_tbl=jnp.asarray(type_tbl),
        nrel_tbl=jnp.asarray(nrel_tbl),
        blk_tbl=jnp.asarray(blk_tbl),
        src_tbl=jnp.asarray(src_tbl),
        val_tbl=jnp.asarray(val_tbl),
        x_slab=jnp.asarray(x_slab, jnp.bfloat16),
        w0=jnp.asarray(w0, jnp.bfloat16),
        wl=[jnp.asarray(w, jnp.bfloat16) for w in wl],
        adj_blocks=jnp.asarray(adj_blocks, jnp.bfloat16),
        out_w=jnp.asarray(out_w, jnp.bfloat16),
        out_b=jnp.asarray(out_b, jnp.float32),
    )


# ----------------------------------------------------------------------------
# HeteroGCN2 forward (mirrors the PyTorch module's semantics)
# ----------------------------------------------------------------------------
def hetero_gcn2_forward(prep, *, num_layers, target_node_type, alpha, beta):
    tile = prep["tile"]

    # Layer 0: batched linear+ReLU for all types; h0 is its (detached) output.
    h = pallas_batched_linear_relu(prep["type_tbl"], prep["x_slab"],
                                   prep["w0"], tile)
    h0 = h
    h = pallas_combine(prep["blk_tbl"], prep["src_tbl"], prep["val_tbl"],
                       prep["nrel_tbl"], prep["adj_blocks"], h, h0,
                       tile=tile, j_max=prep["j_max"], alpha=alpha, beta=beta)
    for l in range(1, num_layers):
        h = pallas_batched_linear_relu(prep["type_tbl"], h,
                                       prep["wl"][l - 1], tile)
        h = pallas_combine(prep["blk_tbl"], prep["src_tbl"], prep["val_tbl"],
                           prep["nrel_tbl"], prep["adj_blocks"], h, h0,
                           tile=tile, j_max=prep["j_max"],
                           alpha=alpha, beta=beta)

    tgt = target_node_type
    logits_p = pallas_out_linear(
        h, prep["out_w"], prep["out_b"], tile=tile,
        row_blk_off=prep["blk_off"][tgt],
        n_blocks=prep["n_pad"][tgt] // tile)
    return logits_p[:prep["counts"][tgt], :prep["out_ch"]]


# Pure-JAX f32 reference (identical math) for the correctness check.
def hetero_gcn2_reference(x_dict, adj_t_dict, params, *, num_layers,
                          target_node_type, alpha, beta):
    h_dict, h0_dict = {}, {}
    for l in range(num_layers):
        for nt in x_dict:
            inp = x_dict[nt] if l == 0 else h_dict[nt]
            h_dict[nt] = jnp.maximum(inp @ params["lins"][nt][l], 0.0)
            if l == 0:
                h0_dict[nt] = h_dict[nt]
        out_dict = {nt: [alpha * h] for nt, h in h_dict.items()}
        for (src, _rel, dst), adj_t in adj_t_dict.items():
            out_dict[dst].append(adj_t @ h_dict[src])
        for nt in x_dict:
            mean = jnp.mean(jnp.stack(out_dict[nt], axis=0), axis=0)
            h_dict[nt] = beta * h0_dict[nt] + (1.0 - beta) * mean
    return h_dict[target_node_type] @ params["out_w"] + params["out_b"]


# ----------------------------------------------------------------------------
# Main: deterministic synthetic params/inputs at small shapes
# ----------------------------------------------------------------------------
if __name__ == "__main__":
    hidden_channels = 32
    out_channels = 8
    num_layers = 2
    alpha, beta = 1.0, 0.1

    node_types = ["paper", "author"]
    num_nodes = {"paper": 64, "author": 32}
    in_feats = {"paper": 48, "author": 24}
    edge_types = [
        ("author", "writes", "paper"),
        ("paper", "rev_writes", "author"),
        ("paper", "cites", "paper"),
    ]
    target_node_type = "paper"

    key = jax.random.PRNGKey(0)

    # Parameters (deterministic). Weights stored as [in, out] (== torch W.T).
    params = {"lins": {}, "out_w": None, "out_b": None}
    for nt in node_types:
        ws = []
        for l in range(num_layers):
            in_dim = in_feats[nt] if l == 0 else hidden_channels
            key, sub = jax.random.split(key)
            ws.append(jax.random.normal(sub, (in_dim, hidden_channels),
                                        jnp.float32) * 0.1)
        params["lins"][nt] = ws
    key, sub = jax.random.split(key)
    params["out_w"] = jax.random.normal(sub, (hidden_channels, out_channels),
                                        jnp.float32) * 0.1
    key, sub = jax.random.split(key)
    params["out_b"] = jax.random.normal(sub, (out_channels,), jnp.float32) * 0.1

    # Node features.
    x_dict = {}
    for nt in node_types:
        key, sub = jax.random.split(key)
        x_dict[nt] = jax.random.normal(sub, (num_nodes[nt], in_feats[nt]),
                                       jnp.float32)

    # Dense adjacency matrices [N_dst, N_src], sparse-ish, row-normalized.
    adj_t_dict = {}
    for (src, rel, dst) in edge_types:
        key, sub = jax.random.split(key)
        a = (jax.random.uniform(sub, (num_nodes[dst], num_nodes[src]))
             < 0.15).astype(jnp.float32)
        deg = jnp.maximum(a.sum(axis=1, keepdims=True), 1.0)
        adj_t_dict[(src, rel, dst)] = a / deg

    # One-time prep (padding / slabs / block-sparse adjacency), then forward.
    prep = hetero_gcn2_prepare(x_dict, adj_t_dict, params,
                               num_layers=num_layers)
    logits = hetero_gcn2_forward(
        prep, num_layers=num_layers, target_node_type=target_node_type,
        alpha=alpha, beta=beta)
    logits = jax.block_until_ready(logits)

    ref = hetero_gcn2_reference(
        x_dict, adj_t_dict, params,
        num_layers=num_layers, target_node_type=target_node_type,
        alpha=alpha, beta=beta)

    assert logits.shape == (num_nodes[target_node_type], out_channels)
    max_err = float(jnp.max(jnp.abs(logits - ref)))
    # bf16 matmul operands / bf16 h storage with f32 accumulation: loosened
    # tolerance vs the pure-f32 reference.
    assert jnp.allclose(logits, ref, atol=3e-2, rtol=3e-2), max_err

    print("KERNEL_OK")
</pallas_src>

<mosaic_0001>
module attributes {stable_mosaic.version = 11 : i64} {
  func.func @_linear_relu_kernel(%arg0: i32, %arg1: memref<2xi32, #tpu.memory_space<smem>>, %arg2: memref<128x128xbf16, #tpu.memory_space<vmem>>, %arg3: memref<1x128x128xbf16, #tpu.memory_space<vmem>>, %arg4: memref<128x128xbf16, #tpu.memory_space<vmem>>) attributes {dimension_semantics = [#tpu.dimension_semantics<parallel>], iteration_bounds = array<i64: 2>, scalar_prefetch = 1 : i64, scratch_operands = 0 : i64, tpu.core_type = #tpu.core_type<tc>, window_params = [{transform_indices = @transform_0, window_bounds = array<i64: 128, 128>}, {transform_indices = @transform_1, window_bounds = array<i64: 1, 128, 128>}, {transform_indices = @transform_2, window_bounds = array<i64: 128, 128>}]} {
    %c0 = arith.constant 0 : index
    %c0_0 = arith.constant 0 : index
    %0 = vector.load %arg2[%c0, %c0_0] : memref<128x128xbf16, #tpu.memory_space<vmem>>, vector<128x128xbf16>
    %c0_1 = arith.constant 0 : index
    %c0_2 = arith.constant 0 : index
    %c0_3 = arith.constant 0 : index
    %1 = vector.load %arg3[%c0_1, %c0_2, %c0_3] : memref<1x128x128xbf16, #tpu.memory_space<vmem>>, vector<1x128x128xbf16>
    %2 = vector.shape_cast %1 : vector<1x128x128xbf16> to vector<128x128xbf16>
    %cst = arith.constant dense<0.000000e+00> : vector<128x128xf32>
    %3 = tpu.matmul %0, %2, %cst {dimension_numbers = #tpu.dot_dimension_numbers<[1], [0], [0], [1], [0, 0, 1, 1], [], []>} : vector<128x128xbf16>, vector<128x128xbf16>, vector<128x128xf32> -> vector<128x128xf32>
    %cst_4 = arith.constant 0.000000e+00 : f32
    %4 = vector.broadcast %cst_4 : f32 to vector<128x128xf32>
    %5 = arith.maximumf %3, %4 : vector<128x128xf32>
    %6 = arith.truncf %5 : vector<128x128xf32> to vector<128x128xbf16>
    %c0_5 = arith.constant 0 : index
    %c0_6 = arith.constant 0 : index
    %7 = vector.load %arg4[%c0_5, %c0_6] : memref<128x128xbf16, #tpu.memory_space<vmem>>, vector<128x128xbf16>
    tpu.vector_store %arg4[%c0_5, %c0_6], %6 {strides = array<i32>} : memref<128x128xbf16, #tpu.memory_space<vmem>>, vector<128x128xbf16>,
    return
  }
  func.func @transform_0(%arg0: i32, %arg1: memref<2xi32, #tpu.memory_space<smem>>) -> (i32, i32) {
    %c0_i32 = arith.constant 0 : i32
    %c0_i32_0 = arith.constant 0 : i32
    return %arg0, %c0_i32 : i32, i32
  }
  func.func @transform_1(%arg0: i32, %arg1: memref<2xi32, #tpu.memory_space<smem>>) -> (i32, i32, i32) {
    %0 = arith.index_cast %arg0 : i32 to index
    %1 = memref.load %arg1[%0] : memref<2xi32, #tpu.memory_space<smem>>
    %c0_i32 = arith.constant 0 : i32
    %c0_i32_0 = arith.constant 0 : i32
    %c0_i32_1 = arith.constant 0 : i32
    return %1, %c0_i32, %c0_i32_0 : i32, i32, i32
  }
  func.func @transform_2(%arg0: i32, %arg1: memref<2xi32, #tpu.memory_space<smem>>) -> (i32, i32) {
    %c0_i32 = arith.constant 0 : i32
    %c0_i32_0 = arith.constant 0 : i32
    return %arg0, %c0_i32 : i32, i32
  }
}

</mosaic_0001>

<llo_original>
// kernel: tpu_custom_call.1
$region0: #{tpu_custom_call.1}
  #allocation0 [shape = 'u32[]', space=smem, size = 0x4, offset = 0x4, fixed_abs, tag = 'smem constant byte address 0x4 - core index']
  #allocation1 [shape = 'u32[144,128]{1,0:T(1,128)}', space=vmem, size = 0x12000, scoped, tag = 'internal scratch']
  #allocation2 [shape = 's32[1]{0}', space=sflag, size = 0x4, scoped, tag = 'scoped memory for tpu_custom_call.1']
  #allocation3 [shape = 'u8[512]{0}', space=smem, size = 0x200, scoped, tag = 'prefetched SMEM operand 0']
  %s0 = inlined_call_operand.hbm [shape: s32[2], index: 0, kind: input, shape index: {}]
  %s1 = inlined_call_operand.hbm [shape: bf16[256,128], index: 1, kind: input, shape index: {}]
  %s2 = inlined_call_operand.hbm [shape: bf16[2,128,128], index: 2, kind: input, shape index: {}]
  %s3 = inlined_call_operand.hbm [shape: bf16[256,128], index: 3, kind: output, shape index: {}]
  %s4 = sld [smem:[#allocation0]]
  $region49: #{tpu_custom_call.1} parent=0
    _
  %s6 = ssub.s32 1, %s4
  %s7 = scalar_select 0, %s6, %s4
  %9 = dma.hbm_to_smem %s0, 16, [#allocation3], [#allocation2]
  %10 = dma.done [#allocation2], 16
  %11 = sfence
  $region1: #{tpu_custom_call.1} parent=0
    #allocation4 [shape = 'u8[65536]{0}', space=vmem, size = 0x10000, scoped, tag = 'input window, operand 1']
    #allocation5 [shape = 's32[2]{0}', space=sflag, size = 0x8, scoped, tag = 'scoped memory for tpu_custom_call.1']
    #allocation6 [shape = 's32[2]{0}', space=sflag, size = 0x8, scoped, tag = 'scoped memory for tpu_custom_call.1']
    #allocation7 [shape = 'u8[65536]{0}', space=vmem, size = 0x10000, scoped, tag = 'input window, operand 2']
    #allocation8 [shape = 's32[2]{0}', space=sflag, size = 0x8, scoped, tag = 'scoped memory for tpu_custom_call.1']
    #allocation9 [shape = 'u8[65536]{0}', space=vmem, size = 0x10000, scoped, tag = 'output window, operand 0']
    %12 = vsyncpa [#allocation5], 0
    %s13 = scalar_lea.sflag [#allocation5], 1
    %14 = vsyncpa %s13, 0
    %15 = vsyncpa [#allocation8], 0
    %s16 = scalar_lea.sflag [#allocation8], 1
    %17 = vsyncpa %s16, 0
    %18 = vsyncpa [#allocation6], 0
    %s19 = scalar_lea.sflag [#allocation6], 1
    %20 = vsyncpa %s19, 0
    loop: start=0, step=1, limit=4
    $region2: #{tpu_custom_call.1} parent=1 // loop_pre_header
      _
    $region3: #{tpu_custom_call.1} parent=1 // loop_header
      %s22 = sphi 0, %s26
      %p23 = scmp.ge.s32.totalorder %s22, 4
      %s32 = sphi 0, %s34
      %s35 = sphi 0, %s32
      %s36 = sphi 0, %s35
      %s52 = sphi 0, %s36
      %s60 = sphi 0, %s62
      %s63 = sphi 0, %s60
      %s64 = sphi 0, %s63
      %s80 = sphi 0, %s64
      %s86 = sphi 0, %s88
      %s89 = sphi 0, %s86
      %s90 = sphi 0, %s89
      %s106 = sphi 0, %s90
    $region4: #{tpu_custom_call.1} parent=1 // loop_header_branch
      %25 = sbr.rel (%p23) target = $region8
    $region5: #{tpu_custom_call.1} parent=1 // loop_body
      %s27 = ssub.s32 %s22, 1
      %s28 = ssub.s32 %s22, 2
      %s29 = sadd.s32 %s22, 1
      %s30 = ssub.s32 %s22, %s29
      %p31 = scmp.eq.s32.totalorder %s30, 0
      %s33 = sadd.s32 %s32, 1
      %s34 = scalar_select %p31, %s32, %s33
      %p37 = pneg %p31
      %p38 = scmp.eq.s32.totalorder %s22, 1
      %p39 = por %p37, %p38
      %p40 = scmp.ne.s32.totalorder %s32, %s35
      %p41 = scmp.eq.s32.totalorder %s22, 0
      %p42 = por %p40, %p41
      %p43 = scmp.ne.s32.totalorder %s32, %s35
      %p44 = scmp.eq.s32.totalorder %s27, 1
      %p45 = por %p43, %p44
      %p46 = scmp.ne.s32.totalorder %s35, %s36
      %p47 = scmp.eq.s32.totalorder %s27, 0
      %p48 = por %p46, %p47
      %p49 = scmp.ne.s32.totalorder %s35, %s36
      %p50 = scmp.eq.s32.totalorder %s28, 1
      %p51 = por %p49, %p50
      %p53 = scmp.ne.s32.totalorder %s36, %s52
      %p54 = scmp.eq.s32.totalorder %s28, 0
      %p55 = por %p53, %p54
      %s56 = sld [smem:[#allocation3 + %s22]]
      %s57 = sld [smem:[#allocation3 + %s29]]
      %s58 = ssub.s32 %s56, %s57
      %p59 = scmp.eq.s32.totalorder %s58, 0
      %s61 = sadd.s32 %s60, 1
      %s62 = scalar_select %p59, %s60, %s61
      %p65 = pneg %p59
      %p66 = scmp.eq.s32.totalorder %s22, 1
      %p67 = por %p65, %p66
      %p68 = scmp.ne.s32.totalorder %s60, %s63
      %p69 = scmp.eq.s32.totalorder %s22, 0
      %p70 = por %p68, %p69
      %p71 = scmp.ne.s32.totalorder %s60, %s63
      %p72 = scmp.eq.s32.totalorder %s27, 1
      %p73 = por %p71, %p72
      %p74 = scmp.ne.s32.totalorder %s63, %s64
      %p75 = scmp.eq.s32.totalorder %s27, 0
      %p76 = por %p74, %p75
      %p77 = scmp.ne.s32.totalorder %s63, %s64
      %p78 = scmp.eq.s32.totalorder %s28, 1
      %p79 = por %p77, %p78
      %p81 = scmp.ne.s32.totalorder %s64, %s80
      %p82 = scmp.eq.s32.totalorder %s28, 0
      %p83 = por %p81, %p82
      %s84 = ssub.s32 %s22, %s29
      %p85 = scmp.eq.s32.totalorder %s84, 0
      %s87 = sadd.s32 %s86, 1
      %s88 = scalar_select %p85, %s86, %s87
      %p91 = pneg %p85
      %p92 = scmp.eq.s32.totalorder %s22, 1
      %p93 = por %p91, %p92
      %p94 = scmp.ne.s32.totalorder %s86, %s89
      %p95 = scmp.eq.s32.totalorder %s22, 0
      %p96 = por %p94, %p95
      %p97 = scmp.ne.s32.totalorder %s86, %s89
      %p98 = scmp.eq.s32.totalorder %s27, 1
      %p99 = por %p97, %p98
      %p100 = scmp.ne.s32.totalorder %s89, %s90
      %p101 = scmp.eq.s32.totalorder %s27, 0
      %p102 = por %p100, %p101
      %p103 = scmp.ne.s32.totalorder %s89, %s90
      %p104 = scmp.eq.s32.totalorder %s28, 1
      %p105 = por %p103, %p104
      %p107 = scmp.ne.s32.totalorder %s90, %s106
      %p108 = scmp.eq.s32.totalorder %s28, 0
      %p109 = por %p107, %p108
      %p110 = scmp.le.s32.totalorder 1, %s22
      %p111 = scmp.lt.s32.totalorder %s22, 3
      %p112 = pnand %p110, %p111
      %p113 = pneg %p112
      // Predicated region
      $region9: #{tpu_custom_call.1} parent=5 // pred_check
        _
      $region10: #{tpu_custom_call.1} parent=5 // pred_check_branch
        %115 = sbr.rel (%p112) target = $region12
      $region11: #{tpu_custom_call.1} parent=5 // pred_region
        %s116 = ssub.s32 %s22, 1
      $region12: #{tpu_custom_call.1} parent=5 // pred_fallthru
        _
      %p117 = scmp.lt.s32.totalorder %s22, 2
      // Predicated region
      $region13: #{tpu_custom_call.1} parent=5 // pred_check
        %p118 = pneg %p117
      $region14: #{tpu_custom_call.1} parent=5 // pred_check_branch
        %120 = sbr.rel (%p118) target = $region16
      $region15: #{tpu_custom_call.1} parent=5 // pred_region
        // Predicated region
        $region17: #{tpu_custom_call.1} parent=15 // pred_check
          %p121 = pneg %p42
        $region18: #{tpu_custom_call.1} parent=15 // pred_check_branch
          %123 = sbr.rel (%p121) target = $region20
        $region19: #{tpu_custom_call.1} parent=15 // pred_region
          %s124 = sand.u32 %s32, 1
          %s125 = scalar_lea.sflag [#allocation5], %s124
          %s126 = sand.u32 %s32, 1
          %s127 = smul.addr %s126, 64
          %s128 = scalar_lea.vmem [#allocation4], %s127
          %s129 = smul.u32 16, %s22
          %s131 = ssub.s32 1024, 1024
          %132 = vsyncadd %s125, %s131
          %s133 = smul.addr %s129, 64
          %s134 = scalar_lea.hbm %s1, %s133
          %s135 = sshll.u32 %s128, 4
          %s136 = int_to_ptr.vmem [resolvable:$true] %s135
          %141 = dma.hbm_to_vmem [thread:$0]  %s134, 1024, %s136, %s125, 64, 64, 4
        $region20: #{tpu_custom_call.1} parent=15 // pred_fallthru
          _
        // Predicated region
        $region21: #{tpu_custom_call.1} parent=15 // pred_check
          %p142 = pneg %p70
        $region22: #{tpu_custom_call.1} parent=15 // pred_check_branch
          %144 = sbr.rel (%p142) target = $region24
        $region23: #{tpu_custom_call.1} parent=15 // pred_region
          %s145 = sand.u32 %s60, 1
          %s146 = scalar_lea.sflag [#allocation8], %s145
          %s147 = sand.u32 %s60, 1
          %s148 = smul.addr %s147, 64
          %s149 = scalar_lea.vmem [#allocation7], %s148
          %s150 = sld [smem:[#allocation3 + %s22]]
          %s152 = ssub.s32 1024, 1024
          %153 = vsyncadd %s146, %s152
          %s154 = smul.addr %s150, 16
          %s155 = smul.addr %s154, 64
          %s156 = scalar_lea.hbm %s2, %s155
          %s157 = sshll.u32 %s149, 4
          %s158 = int_to_ptr.vmem [resolvable:$true] %s157
          %163 = dma.hbm_to_vmem [thread:$0]  %s156, 1024, %s158, %s146, 64, 64, 4
        $region24: #{tpu_custom_call.1} parent=15 // pred_fallthru
          _
      $region16: #{tpu_custom_call.1} parent=5 // pred_fallthru
        _
      %p164 = scmp.le.s32.totalorder 1, %s22
      %p165 = scmp.lt.s32.totalorder %s22, 3
      %p166 = pnand %p164, %p165
      %p167 = pneg %p166
      // Predicated region
      $region25: #{tpu_custom_call.1} parent=5 // pred_check
        _
      $region26: #{tpu_custom_call.1} parent=5 // pred_check_branch
        %169 = sbr.rel (%p166) target = $region28
      $region27: #{tpu_custom_call.1} parent=5 // pred_region
        %s170 = ssub.s32 %s22, 1
        %s171 = sand.u32 %s35, 1
        %s172 = scalar_lea.sflag [#allocation5], %s171
        %s173 = sand.u32 %s35, 1
        %s174 = smul.addr %s173, 64
        %s175 = scalar_lea.vmem [#allocation4], %s174
        // Predicated region
        $region29: #{tpu_custom_call.1} parent=27 // pred_check
          %p176 = pneg %p48
        $region30: #{tpu_custom_call.1} parent=27 // pred_check_branch
          %178 = sbr.rel (%p176) target = $region32
        $region31: #{tpu_custom_call.1} parent=27 // pred_region
          %179 = dma.done %s172, 1024
        $region32: #{tpu_custom_call.1} parent=27 // pred_fallthru
          _
        %s180 = sand.u32 %s63, 1
        %s181 = scalar_lea.sflag [#allocation8], %s180
        %s182 = sand.u32 %s63, 1
        %s183 = smul.addr %s182, 64
        %s184 = scalar_lea.vmem [#allocation7], %s183
        // Predicated region
        $region33: #{tpu_custom_call.1} parent=27 // pred_check
          %p185 = pneg %p76
        $region34: #{tpu_custom_call.1} parent=27 // pred_check_branch
          %187 = sbr.rel (%p185) target = $region36
        $region35: #{tpu_custom_call.1} parent=27 // pred_region
          %188 = dma.done %s181, 1024
        $region36: #{tpu_custom_call.1} parent=27 // pred_fallthru
          _
        %s189 = sand.u32 %s35, 1
        %s190 = scalar_lea.sflag [#allocation5], %s189
        %s191 = sand.u32 %s35, 1
        %s192 = smul.addr %s191, 64
        %s193 = scalar_lea.vmem [#allocation4], %s192
        %p194 = pneg %p48
        %p195 = pneg %p45
        %s196 = sand.u32 %s63, 1
        %s197 = scalar_lea.sflag [#allocation8], %s196
        %s198 = sand.u32 %s63, 1
        %s199 = smul.addr %s198, 64
        %s200 = scalar_lea.vmem [#allocation7], %s199
        %p201 = pneg %p76
        %p202 = pneg %p73
        %p203 = pneg %p102
        %p204 = pneg %p99
        %s205 = sand.u32 %s89, 1
        %s206 = scalar_lea.sflag [#allocation6], %s205
        %s207 = sand.u32 %s89, 1
        %s208 = smul.addr %s207, 64
        %s209 = scalar_lea.vmem [#allocation9], %s208
        %s210 = smul.u32 16, %s27
        %s211 = sld [smem:[#allocation3 + %s27]]
        %s212 = smul.u32 16, %s27
        %v214 = vld [vmem:[%s175] sm:$0xf]
        %v215 = vld [vmem:[%s175 + $0x4] sm:$0xf]
        %v216 = vld [vmem:[%s175 + $0x8] sm:$0xf]
        %v217 = vld [vmem:[%s175 + $0xc] sm:$0xf]
        %v218 = vld [vmem:[%s175 + $0x10] sm:$0xf]
        %v219 = vld [vmem:[%s175 + $0x14] sm:$0xf]
        %v220 = vld [vmem:[%s175 + $0x18] sm:$0xf]
        %v221 = vld [vmem:[%s175 + $0x1c] sm:$0xf]
        %v222 = vld [vmem:[%s175 + $0x20] sm:$0xf]
        %v223 = vld [vmem:[%s175 + $0x24] sm:$0xf]
        %v224 = vld [vmem:[%s175 + $0x28] sm:$0xf]
        %v225 = vld [vmem:[%s175 + $0x2c] sm:$0xf]
        %v226 = vld [vmem:[%s175 + $0x30] sm:$0xf]
        %v227 = vld [vmem:[%s175 + $0x34] sm:$0xf]
        %v228 = vld [vmem:[%s175 + $0x38] sm:$0xf]
        %v229 = vld [vmem:[%s175 + $0x3c] sm:$0xf]
        %v230 = vld [vmem:[%s184] sm:$0xf]
        %v231 = vld [vmem:[%s184 + $0x4] sm:$0xf]
        %v232 = vld [vmem:[%s184 + $0x8] sm:$0xf]
        %v233 = vld [vmem:[%s184 + $0xc] sm:$0xf]
        %v234 = vld [vmem:[%s184 + $0x10] sm:$0xf]
        %v235 = vld [vmem:[%s184 + $0x14] sm:$0xf]
        %v236 = vld [vmem:[%s184 + $0x18] sm:$0xf]
        %v237 = vld [vmem:[%s184 + $0x1c] sm:$0xf]
        %v238 = vld [vmem:[%s184 + $0x20] sm:$0xf]
        %v239 = vld [vmem:[%s184 + $0x24] sm:$0xf]
        %v240 = vld [vmem:[%s184 + $0x28] sm:$0xf]
        %v241 = vld [vmem:[%s184 + $0x2c] sm:$0xf]
        %v242 = vld [vmem:[%s184 + $0x30] sm:$0xf]
        %v243 = vld [vmem:[%s184 + $0x34] sm:$0xf]
        %v244 = vld [vmem:[%s184 + $0x38] sm:$0xf]
        %v245 = vld [vmem:[%s184 + $0x3c] sm:$0xf]
        %v262 = vunpack.c.l.b16 %v214
        %v263 = vunpack.c.l.b16 %v215
        %v264 = vunpack.c.l.b16 %v216
        %v265 = vunpack.c.l.b16 %v217
        %v266 = vunpack.c.l.b16 %v218
        %v267 = vunpack.c.l.b16 %v219
        %v268 = vunpack.c.l.b16 %v220
        %v269 = vunpack.c.l.b16 %v221
        %v270 = vunpack.c.l.b16 %v222
        %v271 = vunpack.c.l.b16 %v223
        %v272 = vunpack.c.l.b16 %v224
        %v273 = vunpack.c.l.b16 %v225
        %v274 = vunpack.c.l.b16 %v226
        %v275 = vunpack.c.l.b16 %v227
        %v276 = vunpack.c.l.b16 %v228
        %v277 = vunpack.c.l.b16 %v229
        %v278 = vpack.c.b16 %v263, %v262
        %v279 = vpack.c.b16 %v265, %v264
        %v280 = vpack.c.b16 %v267, %v266
        %v281 = vpack.c.b16 %v269, %v268
        %v282 = vpack.c.b16 %v271, %v270
        %v283 = vpack.c.b16 %v273, %v272
        %v284 = vpack.c.b16 %v275, %v274
        %v285 = vpack.c.b16 %v277, %v276
        %v310 = vunpack.c.l.b16 %v230
        %v311 = vunpack.c.l.b16 %v231
        %v312 = vunpack.c.l.b16 %v232
        %v313 = vunpack.c.l.b16 %v233
        %v314 = vunpack.c.l.b16 %v234
        %v315 = vunpack.c.l.b16 %v235
        %v316 = vunpack.c.l.b16 %v236
        %v317 = vunpack.c.l.b16 %v237
        %v318 = vunpack.c.l.b16 %v238
        %v319 = vunpack.c.l.b16 %v239
        %v320 = vunpack.c.l.b16 %v240
        %v321 = vunpack.c.l.b16 %v241
        %v322 = vunpack.c.l.b16 %v242
        %v323 = vunpack.c.l.b16 %v243
        %v324 = vunpack.c.l.b16 %v244
        %v325 = vunpack.c.l.b16 %v245
        %v326 = vpack.c.b16 %v311, %v310
        %v327 = vpack.c.b16 %v313, %v312
        %v328 = vpack.c.b16 %v315, %v314
        %v329 = vpack.c.b16 %v317, %v316
        %v330 = vpack.c.b16 %v319, %v318
        %v331 = vpack.c.b16 %v321, %v320
        %v332 = vpack.c.b16 %v323, %v322
        %v333 = vpack.c.b16 %v325, %v324
        %342 = vmatprep.subr.bf16.mxu0 0
        %343 = vmatpush1.bf16.msra.mxu0 %v326
        %344 = vmatprep.subr.bf16.mxu0 0
        %345 = vmatpush1.bf16.msra.mxu0 %v327
        %346 = vmatprep.subr.bf16.mxu0 0
        %347 = vmatpush1.bf16.msra.mxu0 %v328
        %348 = vmatprep.subr.bf16.mxu0 0
        %349 = vmatpush1.bf16.msra.mxu0 %v329
        %350 = vmatprep.subr.bf16.mxu0 0
        %351 = vmatpush1.bf16.msra.mxu0 %v330
        %352 = vmatprep.subr.bf16.mxu0 0
        %353 = vmatpush1.bf16.msra.mxu0 %v331
        %354 = vmatprep.subr.bf16.mxu0 0
        %355 = vmatpush1.bf16.msra.mxu0 %v332
        %356 = vmatprep.subr.bf16.mxu0 0
        %357 = vmatpush1.bf16.msra.mxu0 %v333
        %358 = vmatprep.subr.bf16.mxu0 0
        %359 = vmatpush1.bf16.msra.mxu0 0
        %360 = vmatprep.subr.bf16.mxu0 0
        %361 = vmatpush1.bf16.msra.mxu0 0
        %362 = vmatprep.subr.bf16.mxu0 0
        %363 = vmatpush1.bf16.msra.mxu0 0
        %364 = vmatprep.subr.bf16.mxu0 0
        %365 = vmatpush1.bf16.msra.mxu0 0
        %366 = vmatprep.subr.bf16.mxu0 0
        %367 = vmatpush1.bf16.msra.mxu0 0
        %368 = vmatprep.subr.bf16.mxu0 0
        %369 = vmatpush1.bf16.msra.mxu0 0
        %370 = vmatprep.subr.bf16.mxu0 0
        %371 = vmatpush1.bf16.msra.mxu0 0
        %372 = vmatprep.subr.bf16.mxu0 0
        %373 = vmatpush1.bf16.msra.mxu0 0
        %374 = vmatprep.mubr.bf16.mxu0 0
        %375 = vmatmul.mubr.bf16.gmra.mrb[0].mxu0 %v278
        %v376 = vpop.f32.mrb[0].mxu0
        %v377 = vadd.f32 0.0, %v376
        %v378 = vpop.f32.mrb[0].mxu0
        %v379 = vpop.f32.mrb[0].mxu0
        %v380 = vadd.f32 0.0, %v379
        %v381 = vpop.f32.mrb[0].mxu0
        %382 = vmatprep.mubr.bf16.mxu0 0
        %383 = vmatmul.mubr.bf16.gmra.mrb[0].mxu0 %v279
        %v384 = vpop.f32.mrb[0].mxu0
        %v385 = vadd.f32 0.0, %v384
        %v386 = vpop.f32.mrb[0].mxu0
        %v387 = vpop.f32.mrb[0].mxu0
        %v388 = vadd.f32 0.0, %v387
        %v389 = vpop.f32.mrb[0].mxu0
        %390 = vmatprep.mubr.bf16.mxu0 0
        %391 = vmatmul.mubr.bf16.gmra.mrb[0].mxu0 %v280
        %v392 = vpop.f32.mrb[0].mxu0
        %v393 = vadd.f32 0.0, %v392
        %v394 = vpop.f32.mrb[0].mxu0
        %v395 = vpop.f32.mrb[0].mxu0
        %v396 = vadd.f32 0.0, %v395
        %v397 = vpop.f32.mrb[0].mxu0
        %398 = vmatprep.mubr.bf16.mxu0 0
        %399 = vmatmul.mubr.bf16.gmra.mrb[0].mxu0 %v281
        %v400 = vpop.f32.mrb[0].mxu0
        %v401 = vadd.f32 0.0, %v400
        %v402 = vpop.f32.mrb[0].mxu0
        %v403 = vpop.f32.mrb[0].mxu0
        %v404 = vadd.f32 0.0, %v403
        %v405 = vpop.f32.mrb[0].mxu0
        %406 = vmatprep.mubr.bf16.mxu0 0
        %407 = vmatmul.mubr.bf16.gmra.mrb[0].mxu0 %v282
        %v408 = vpop.f32.mrb[0].mxu0
        %v409 = vadd.f32 0.0, %v408
        %v410 = vpop.f32.mrb[0].mxu0
        %v411 = vpop.f32.mrb[0].mxu0
        %v412 = vadd.f32 0.0, %v411
        %v413 = vpop.f32.mrb[0].mxu0
        %414 = vmatprep.mubr.bf16.mxu0 0
        %415 = vmatmul.mubr.bf16.gmra.mrb[0].mxu0 %v283
        %v416 = vpop.f32.mrb[0].mxu0
        %v417 = vadd.f32 0.0, %v416
        %v418 = vpop.f32.mrb[0].mxu0
        %v419 = vpop.f32.mrb[0].mxu0
        %v420 = vadd.f32 0.0, %v419
        %v421 = vpop.f32.mrb[0].mxu0
        %422 = vmatprep.mubr.bf16.mxu0 0
        %423 = vmatmul.mubr.bf16.gmra.mrb[0].mxu0 %v284
        %v424 = vpop.f32.mrb[0].mxu0
        %v425 = vadd.f32 0.0, %v424
        %v426 = vpop.f32.mrb[0].mxu0
        %v427 = vpop.f32.mrb[0].mxu0
        %v428 = vadd.f32 0.0, %v427
        %v429 = vpop.f32.mrb[0].mxu0
        %430 = vmatprep.mubr.bf16.mxu0 0
        %431 = vmatmul.mubr.bf16.gmra.mrb[0].mxu0 %v285
        %v432 = vpop.f32.mrb[0].mxu0
        %v433 = vadd.f32 0.0, %v432
        %v434 = vpop.f32.mrb[0].mxu0
        %v435 = vpop.f32.mrb[0].mxu0
        %v436 = vadd.f32 0.0, %v435
        %v437 = vpop.f32.mrb[0].mxu0
        %438 = vdwg.mxu0
        %v439 = vmax.f32 %v377, 0.0
        %v440 = vmax.f32 %v380, 0.0
        %v441 = vmax.f32 %v385, 0.0
        %v442 = vmax.f32 %v388, 0.0
        %v443 = vmax.f32 %v393, 0.0
        %v444 = vmax.f32 %v396, 0.0
        %v445 = vmax.f32 %v401, 0.0
        %v446 = vmax.f32 %v404, 0.0
        %v447 = vmax.f32 %v409, 0.0
        %v448 = vmax.f32 %v412, 0.0
        %v449 = vmax.f32 %v417, 0.0
        %v450 = vmax.f32 %v420, 0.0
        %v451 = vmax.f32 %v425, 0.0
        %v452 = vmax.f32 %v428, 0.0
        %v453 = vmax.f32 %v433, 0.0
        %v454 = vmax.f32 %v436, 0.0
        %v455 = vpack.c.bf16 %v440, %v439
        %v456 = vpack.c.bf16 %v442, %v441
        %v457 = vpack.c.bf16 %v444, %v443
        %v458 = vpack.c.bf16 %v446, %v445
        %v459 = vpack.c.bf16 %v448, %v447
        %v460 = vpack.c.bf16 %v450, %v449
        %v461 = vpack.c.bf16 %v452, %v451
        %v462 = vpack.c.bf16 %v454, %v453
        %v471 = vunpack.c.l.b16 %v455
        %v472 = vunpack.c.h.b16 %v455
        %v473 = vunpack.c.l.b16 %v456
        %v474 = vunpack.c.h.b16 %v456
        %v475 = vunpack.c.l.b16 %v457
        %v476 = vunpack.c.h.b16 %v457
        %v477 = vunpack.c.l.b16 %v458
        %v478 = vunpack.c.h.b16 %v458
        %v479 = vunpack.c.l.b16 %v459
        %v480 = vunpack.c.h.b16 %v459
        %v481 = vunpack.c.l.b16 %v460
        %v482 = vunpack.c.h.b16 %v460
        %v483 = vunpack.c.l.b16 %v461
        %v484 = vunpack.c.h.b16 %v461
        %v485 = vunpack.c.l.b16 %v462
        %v486 = vunpack.c.h.b16 %v462
        %v487 = vpack.c.b16 %v471, %v471
        %v488 = vpack.c.b16 %v472, %v472
        %v489 = vpack.c.b16 %v473, %v473
        %v490 = vpack.c.b16 %v474, %v474
        %v491 = vpack.c.b16 %v475, %v475
        %v492 = vpack.c.b16 %v476, %v476
        %v493 = vpack.c.b16 %v477, %v477
        %v494 = vpack.c.b16 %v478, %v478
        %v495 = vpack.c.b16 %v479, %v479
        %v496 = vpack.c.b16 %v480, %v480
        %v497 = vpack.c.b16 %v481, %v481
        %v498 = vpack.c.b16 %v482, %v482
        %v499 = vpack.c.b16 %v483, %v483
        %v500 = vpack.c.b16 %v484, %v484
        %v501 = vpack.c.b16 %v485, %v485
        %v502 = vpack.c.b16 %v486, %v486
        %519 = vst [vmem:[%s209] sm:$0xf] %v487
        %520 = vst [vmem:[%s209 + $0x4] sm:$0xf] %v488
        %521 = vst [vmem:[%s209 + $0x8] sm:$0xf] %v489
        %522 = vst [vmem:[%s209 + $0xc] sm:$0xf] %v490
        %523 = vst [vmem:[%s209 + $0x10] sm:$0xf] %v491
        %524 = vst [vmem:[%s209 + $0x14] sm:$0xf] %v492
        %525 = vst [vmem:[%s209 + $0x18] sm:$0xf] %v493
        %526 = vst [vmem:[%s209 + $0x1c] sm:$0xf] %v494
        %527 = vst [vmem:[%s209 + $0x20] sm:$0xf] %v495
        %528 = vst [vmem:[%s209 + $0x24] sm:$0xf] %v496
        %529 = vst [vmem:[%s209 + $0x28] sm:$0xf] %v497
        %530 = vst [vmem:[%s209 + $0x2c] sm:$0xf] %v498
        %531 = vst [vmem:[%s209 + $0x30] sm:$0xf] %v499
        %532 = vst [vmem:[%s209 + $0x34] sm:$0xf] %v500
        %533 = vst [vmem:[%s209 + $0x38] sm:$0xf] %v501
        %534 = vst [vmem:[%s209 + $0x3c] sm:$0xf] %v502
        %s535 = sand.u32 %s89, 1
        %s536 = scalar_lea.sflag [#allocation6], %s535
        %s537 = sand.u32 %s89, 1
        %s538 = smul.addr %s537, 64
        %s539 = scalar_lea.vmem [#allocation9], %s538
        // Predicated region
        $region37: #{tpu_custom_call.1} parent=27 // pred_check
          %p540 = pneg %p99
        $region38: #{tpu_custom_call.1} parent=27 // pred_check_branch
          %542 = sbr.rel (%p540) target = $region40
        $region39: #{tpu_custom_call.1} parent=27 // pred_region
          %s543 = smul.u32 16, %s27
          %s545 = ssub.s32 1024, 1024
          %546 = vsyncadd %s536, %s545
          %s547 = smul.addr %s543, 64
          %s548 = scalar_lea.hbm %s3, %s547
          %s549 = sshll.u32 %s539, 4
          %s550 = int_to_ptr.vmem [resolvable:$true] %s549
          %555 = dma.vmem_to_hbm [thread:$0]  %s550, 1024, %s548, %s536, 64, 64, 4
        $region40: #{tpu_custom_call.1} parent=27 // pred_fallthru
          _
      $region28: #{tpu_custom_call.1} parent=5 // pred_fallthru
        _
      %p556 = scmp.le.s32.totalorder 2, %s22
      // Predicated region
      $region41: #{tpu_custom_call.1} parent=5 // pred_check
        %p557 = pneg %p556
      $region42: #{tpu_custom_call.1} parent=5 // pred_check_branch
        %559 = sbr.rel (%p557) target = $region44
      $region43: #{tpu_custom_call.1} parent=5 // pred_region
        %s560 = ssub.s32 %s22, 2
        // Predicated region
        $region45: #{tpu_custom_call.1} parent=43 // pred_check
          %p561 = pneg %p105
        $region46: #{tpu_custom_call.1} parent=43 // pred_check_branch
          %563 = sbr.rel (%p561) target = $region48
        $region47: #{tpu_custom_call.1} parent=43 // pred_region
          %s564 = sand.u32 %s90, 1
          %s565 = scalar_lea.sflag [#allocation6], %s564
          %s566 = sand.u32 %s90, 1
          %s567 = smul.addr %s566, 64
          %s568 = scalar_lea.vmem [#allocation9], %s567
          %569 = dma.done %s565, 1024
        $region48: #{tpu_custom_call.1} parent=43 // pred_fallthru
          _
      $region44: #{tpu_custom_call.1} parent=5 // pred_fallthru
        _
    $region6: #{tpu_custom_call.1} parent=1 // loop_footer
      %s26 = sadd.s32 1, %s22
    $region7: #{tpu_custom_call.1} parent=1 // loop_footer_branch
      %21 = sbr.rel target = $region3
    $region8: #{tpu_custom_call.1} parent=1 // loop_exit
      _
    %570 = vsyncpa [#allocation5], 1
    %s571 = scalar_lea.sflag [#allocation5], 1
    %572 = vsyncpa %s571, 1
    %573 = vsyncpa [#allocation8], 1
    %s574 = scalar_lea.sflag [#allocation8], 1
    %575 = vsyncpa %s574, 1
    %576 = vsyncpa [#allocation6], 1
    %s577 = scalar_lea.sflag [#allocation6], 1
    %578 = vsyncpa %s577, 1

</llo_original>
